<compile_context>
chip_gen: v6e
topology: v6e:2x2x1
jax: 0.10.0
libtpu: 0.0.40
codegen_flags: <defaults>
</compile_context>

<pallas_src>
import functools

import jax
import jax.numpy as jnp
from jax.experimental import pallas as pl
from jax.experimental.pallas import tpu as pltpu

_LANES = 128


def _round_up(v, m):
    return -(-v // m) * m


def _largest_divisor_leq(n, want):
    want = max(1, min(n, want))
    for cand in range(want, 0, -1):
        if n % cand == 0:
            return cand
    return 1


def _vmem_capacity_bytes():
    try:
        info = pltpu.get_tpu_info()
        cap = getattr(info, "vmem_capacity_bytes", None)
        if cap:
            return int(cap)
    except Exception:
        pass
    return 64 * 1024 * 1024  # conservative default: v7x per-TC VMEM


def _grayscale_mse_kernel(x_ref, y_ref, o_ref, *scratch, tile, valid,
                          needs_mask, single_step):
    """Accumulates sum over (n, spatial) of (sum_c (x - y))^2 for one grid row.

    Block layouts (chosen by the wrapper):
      dense: x/y blocks (Nb, C, S_tile, 128) -> channel reduce is outer-dim VPU adds
      flat : x/y blocks (Nb, C, tile)        -> channel reduce crosses sublanes (XLU)
    In both layouts the tiled/masked axis is dimension 1 of `s`.
    """
    j = pl.program_id(1)
    d = x_ref[...].astype(jnp.float32) - y_ref[...].astype(jnp.float32)
    s = jnp.sum(d, axis=1)  # per-pixel channel-summed difference

    if single_step:
        # Whole reduction axis in one block: no scratch, no mask, write directly.
        o_ref[...] = jnp.zeros(o_ref.shape, jnp.float32) + jnp.sum(s * s)
        return

    acc_ref = scratch[0]
    last = pl.num_programs(1) - 1

    @pl.when(j == 0)
    def _():
        acc_ref[...] = jnp.zeros_like(acc_ref)

    if needs_mask:
        # Steady-state steps accumulate unmasked; only the final (overhanging)
        # block pays for the iota + select.  The select is applied to `s`
        # *before* squaring so stale/NaN padded lanes cannot leak in.
        @pl.when(j != last)
        def _():
            acc_ref[...] += s * s

        @pl.when(j == last)
        def _():
            pos = j * tile + jax.lax.broadcasted_iota(jnp.int32, s.shape, 1)
            sm = jnp.where(pos < valid, s, 0.0)
            acc_ref[...] += sm * sm
    else:
        acc_ref[...] += s * s

    @pl.when(j == last)
    def _():
        # Single cross-lane/sublane reduce per grid row; splat to a lane-dense block.
        o_ref[...] = jnp.zeros(o_ref.shape, jnp.float32) + jnp.sum(acc_ref[...])


def grayscale_loss(x, y, *, vmem_budget_bytes=None):
    """loss = mean((mean_c x - mean_c y)^2) for NCHW x, y (PyTorch GrayscaleLoss)."""
    assert x.shape == y.shape, (x.shape, y.shape)
    assert x.dtype == y.dtype, (x.dtype, y.dtype)
    N, C, H, W = x.shape
    HW = H * W
    itemsize = jnp.dtype(x.dtype).itemsize
    # sublane granularity for this dtype (8 for f32, 16 for bf16, 32 for int8)
    sub = 8 * max(1, 4 // max(1, itemsize))

    vmem_cap = _vmem_capacity_bytes()
    if vmem_budget_bytes is None:
        # generation-aware: ~16 MiB on v7x (64 MiB VMEM), ~32 MiB on v5e/v6e (128 MiB)
        vmem_budget_bytes = max(4 << 20, vmem_cap // 4)

    dense = (HW % _LANES) == 0

    if dense:
        # Spatial axis is (sublane, lane)-dense; channel reduce is outer-dim adds.
        S = HW // _LANES
        xf = x.reshape(N, C, S, _LANES)
        yf = y.reshape(N, C, S, _LANES)
        # bytes per (Nb * S_tile) row of 128 lanes:
        #   2 inputs * 2 pipeline buffers of C sublane-rows + one f32 acc row
        per_row = 4 * C * _LANES * itemsize + _LANES * 4
        max_rows = max(sub, vmem_budget_bytes // per_row)
        if S <= max_rows:
            s_tile, grid_s = S, 1
            nb_want = max(1, max_rows // S)
            nb_want = min(nb_want, max(1, N // 2))  # keep >=2 grid rows for megacore
            Nb = _largest_divisor_leq(N, nb_want)
        else:
            Nb = 1
            s_tile = max(sub, (max_rows // sub) * sub)
            if s_tile >= S:
                s_tile = S
            grid_s = pl.cdiv(S, s_tile)
        tile, valid = s_tile, S
        needs_mask = (S % s_tile) != 0
        block = (Nb, C, s_tile, _LANES)
        acc_shape = (Nb, s_tile, _LANES)
        in_specs = [pl.BlockSpec(block, lambda i, j: (i, 0, j, 0)),
                    pl.BlockSpec(block, lambda i, j: (i, 0, j, 0))]
        in_block_bytes = Nb * C * _round_up(s_tile, sub) * _LANES * itemsize
        acc_bytes = Nb * _round_up(s_tile, 8) * _LANES * 4
    else:
        # Fallback for HW not a multiple of 128: channels on sublanes, HW on lanes.
        xf = x.reshape(N, C, HW)
        yf = y.reshape(N, C, HW)
        per_elem = 4 * _round_up(C, sub) * itemsize + 8 * 4
        max_elems = max(_LANES, vmem_budget_bytes // per_elem)
        if HW <= max_elems:
            tile, grid_s = HW, 1
            nb_want = max(1, max_elems // HW)
            nb_want = min(nb_want, max(1, N // 2))
            Nb = _largest_divisor_leq(N, nb_want)
        else:
            Nb = 1
            tile = max(_LANES, (max_elems // _LANES) * _LANES)
            if tile >= HW:
                tile = HW
            grid_s = pl.cdiv(HW, tile)
        valid = HW
        needs_mask = (HW % tile) != 0
        block = (Nb, C, tile)
        acc_shape = (Nb, tile)
        in_specs = [pl.BlockSpec(block, lambda i, j: (i, 0, j)),
                    pl.BlockSpec(block, lambda i, j: (i, 0, j))]
        in_block_bytes = Nb * _round_up(C, sub) * _round_up(tile, _LANES) * itemsize
        acc_bytes = _round_up(Nb, 8) * _round_up(tile, _LANES) * 4

    grid_n = N // Nb
    single_step = (grid_s == 1)
    scratch_shapes = [] if single_step else [pltpu.VMEM(acc_shape, jnp.float32)]

    # Actual VMEM footprint + headroom, clamped to this chip's capacity.
    usage = 4 * in_block_bytes + (0 if single_step else acc_bytes) + 2 * 8 * _LANES * 4
    vmem_limit = int(min(vmem_cap, max(usage + (8 << 20), 32 << 20)))

    kernel = functools.partial(
        _grayscale_mse_kernel, tile=tile, valid=valid,
        needs_mask=needs_mask, single_step=single_step)

    flops = 3 * N * C * HW  # sub + channel add + square/acc (advisory)
    bytes_accessed = 2 * N * C * HW * itemsize + grid_n * 8 * _LANES * 4

    partials = pl.pallas_call(
        kernel,
        out_shape=jax.ShapeDtypeStruct((grid_n, 8, _LANES), jnp.float32),
        grid_spec=pltpu.PrefetchScalarGridSpec(
            num_scalar_prefetch=0,
            grid=(grid_n, grid_s),
            in_specs=in_specs,
            out_specs=pl.BlockSpec((1, 8, _LANES), lambda i, j: (i, 0, 0)),
            scratch_shapes=scratch_shapes,
        ),
        compiler_params=pltpu.CompilerParams(
            # batch axis parallel -> shards across both v7x TensorCores;
            # spatial reduction axis stays sequential per output block.
            dimension_semantics=("parallel", "arbitrary"),
            vmem_limit_bytes=vmem_limit,
        ),
        cost_estimate=pl.CostEstimate(
            flops=flops, transcendentals=0, bytes_accessed=bytes_accessed),
    )(xf, yf)

    # (mean_c x - mean_c y)^2 == (sum_c (x - y))^2 / C^2, MSE over N*H*W elements
    scale = 1.0 / float(N * HW * C * C)
    return jnp.sum(partials[:, 0, 0]) * jnp.float32(scale)


def _reference(x, y):
    xg = jnp.mean(x.astype(jnp.float32), axis=1)
    yg = jnp.mean(y.astype(jnp.float32), axis=1)
    return jnp.mean((xg - yg) ** 2)


if __name__ == "__main__":
    key = jax.random.PRNGKey(0)
    k = jax.random.split(key, 6)

    # 1) primary NCHW case (dense layout: HW % 128 == 0, single-step, batch-parallel)
    x = jax.random.normal(k[0], (2, 4, 16, 16), dtype=jnp.float32)
    y = jax.random.normal(k[1], (2, 4, 16, 16), dtype=jnp.float32)
    out = grayscale_loss(x, y)
    jax.block_until_ready(out)
    ref = _reference(x, y)
    assert jnp.allclose(out, ref, rtol=1e-5, atol=1e-6), (out, ref)

    # 2) odd spatial size (flat fallback) with a tiny budget -> multi-step grid
    #    plus the masked tail path
    x2 = jax.random.normal(k[2], (2, 3, 20, 20), dtype=jnp.float32)
    y2 = jax.random.normal(k[3], (2, 3, 20, 20), dtype=jnp.float32)
    out2 = grayscale_loss(x2, y2, vmem_budget_bytes=32_000)
    jax.block_until_ready(out2)
    ref2 = _reference(x2, y2)
    assert jnp.allclose(out2, ref2, rtol=1e-5, atol=1e-6), (out2, ref2)

    # 3) 128-divisible spatial size with a tiny budget -> dense multi-step +
    #    masked-tail path
    x3 = jax.random.normal(k[4], (1, 3, 128, 100), dtype=jnp.float32)
    y3 = jax.random.normal(k[5], (1, 3, 128, 100), dtype=jnp.float32)
    out3 = grayscale_loss(x3, y3, vmem_budget_bytes=40_000)
    jax.block_until_ready(out3)
    ref3 = _reference(x3, y3)
    assert jnp.allclose(out3, ref3, rtol=1e-5, atol=1e-6), (out3, ref3)

    print("KERNEL_OK")
</pallas_src>

<mosaic_0001>
module attributes {stable_mosaic.version = 11 : i64} {
  func.func @_grayscale_mse_kernel(%arg0: i32, %arg1: i32, %arg2: memref<1x4x2x128xf32, #tpu.memory_space<vmem>>, %arg3: memref<1x4x2x128xf32, #tpu.memory_space<vmem>>, %arg4: memref<1x8x128xf32, #tpu.memory_space<vmem>>) attributes {dimension_semantics = [#tpu.dimension_semantics<parallel>, #tpu.dimension_semantics<arbitrary>], iteration_bounds = array<i64: 2, 1>, scalar_prefetch = 0 : i64, scratch_operands = 0 : i64, tpu.core_type = #tpu.core_type<tc>, window_params = [{transform_indices = @transform_0, window_bounds = array<i64: 1, 4, 2, 128>}, {transform_indices = @transform_1, window_bounds = array<i64: 1, 4, 2, 128>}, {transform_indices = @transform_2, window_bounds = array<i64: 1, 8, 128>}]} {
    %c0 = arith.constant 0 : index
    %c0_0 = arith.constant 0 : index
    %c0_1 = arith.constant 0 : index
    %c0_2 = arith.constant 0 : index
    %0 = vector.load %arg2[%c0, %c0_0, %c0_1, %c0_2] : memref<1x4x2x128xf32, #tpu.memory_space<vmem>>, vector<1x4x2x128xf32>
    %c0_3 = arith.constant 0 : index
    %c0_4 = arith.constant 0 : index
    %c0_5 = arith.constant 0 : index
    %c0_6 = arith.constant 0 : index
    %1 = vector.load %arg3[%c0_3, %c0_4, %c0_5, %c0_6] : memref<1x4x2x128xf32, #tpu.memory_space<vmem>>, vector<1x4x2x128xf32>
    %2 = arith.subf %0, %1 : vector<1x4x2x128xf32>
    %cst = arith.constant dense<0.000000e+00> : vector<1x2x128xf32>
    %3 = vector.multi_reduction <add>, %2, %cst [1] : vector<1x4x2x128xf32> to vector<1x2x128xf32>
    %cst_7 = arith.constant 0.000000e+00 : f32
    %4 = vector.broadcast %cst_7 : f32 to vector<1x8x128xf32>
    %5 = arith.mulf %3, %3 : vector<1x2x128xf32>
    %6 = vector.shape_cast %5 : vector<1x2x128xf32> to vector<1x1x2x128xf32>
    %cst_8 = arith.constant dense<0.000000e+00> : vector<1xf32>
    %7 = vector.multi_reduction <add>, %6, %cst_8 [1, 2, 3] : vector<1x1x2x128xf32> to vector<1xf32>
    %8 = vector.shape_cast %7 : vector<1xf32> to vector<1x1x1x1xf32>
    %9 = vector.extract %8[0, 0, 0, 0] : f32 from vector<1x1x1x1xf32>
    %10 = vector.broadcast %9 : f32 to vector<1x8x128xf32>
    %11 = arith.addf %4, %10 : vector<1x8x128xf32>
    %c0_9 = arith.constant 0 : index
    %c0_10 = arith.constant 0 : index
    %c0_11 = arith.constant 0 : index
    %12 = vector.load %arg4[%c0_9, %c0_10, %c0_11] : memref<1x8x128xf32, #tpu.memory_space<vmem>>, vector<1x8x128xf32>
    tpu.vector_store %arg4[%c0_9, %c0_10, %c0_11], %11 {strides = array<i32>} : memref<1x8x128xf32, #tpu.memory_space<vmem>>, vector<1x8x128xf32>,
    return
  }
  func.func @transform_0(%arg0: i32, %arg1: i32) -> (i32, i32, i32, i32) {
    %c0_i32 = arith.constant 0 : i32
    %c0_i32_0 = arith.constant 0 : i32
    %c0_i32_1 = arith.constant 0 : i32
    return %arg0, %c0_i32, %arg1, %c0_i32_0 : i32, i32, i32, i32
  }
  func.func @transform_1(%arg0: i32, %arg1: i32) -> (i32, i32, i32, i32) {
    %c0_i32 = arith.constant 0 : i32
    %c0_i32_0 = arith.constant 0 : i32
    %c0_i32_1 = arith.constant 0 : i32
    return %arg0, %c0_i32, %arg1, %c0_i32_0 : i32, i32, i32, i32
  }
  func.func @transform_2(%arg0: i32, %arg1: i32) -> (i32, i32, i32) {
    %c0_i32 = arith.constant 0 : i32
    %c0_i32_0 = arith.constant 0 : i32
    %c0_i32_1 = arith.constant 0 : i32
    return %arg0, %c0_i32, %c0_i32_0 : i32, i32, i32
  }
}

</mosaic_0001>

<llo_original>
// kernel: tpu_custom_call.1
$region0: #{tpu_custom_call.1}
  #allocation0 [shape = 'u32[]', space=smem, size = 0x4, offset = 0x4, fixed_abs, tag = 'smem constant byte address 0x4 - core index']
  #allocation1 [shape = 'u32[144,128]{1,0:T(1,128)}', space=vmem, size = 0x12000, scoped, tag = 'internal scratch']
  %s0 = inlined_call_operand.hbm [shape: f32[2,4,2,128], index: 0, kind: input, shape index: {}]
  %s1 = inlined_call_operand.hbm [shape: f32[2,4,2,128], index: 1, kind: input, shape index: {}]
  %s2 = inlined_call_operand.hbm [shape: f32[2,8,128], index: 2, kind: output, shape index: {}]
  %s3 = sld [smem:[#allocation0]]
  $region49: #{tpu_custom_call.1} parent=0
    _
  %s5 = ssub.s32 1, %s3
  %s6 = scalar_select 0, %s5, %s3
  $region1: #{tpu_custom_call.1} parent=0
    #allocation2 [shape = 'u8[8192]{0}', space=vmem, size = 0x2000, scoped, tag = 'input window, operand 0']
    #allocation3 [shape = 's32[2]{0}', space=sflag, size = 0x8, scoped, tag = 'scoped memory for tpu_custom_call.1']
    #allocation4 [shape = 's32[2]{0}', space=sflag, size = 0x8, scoped, tag = 'scoped memory for tpu_custom_call.1']
    #allocation5 [shape = 'u8[8192]{0}', space=vmem, size = 0x2000, scoped, tag = 'input window, operand 1']
    #allocation6 [shape = 's32[2]{0}', space=sflag, size = 0x8, scoped, tag = 'scoped memory for tpu_custom_call.1']
    #allocation7 [shape = 'u8[8192]{0}', space=vmem, size = 0x2000, scoped, tag = 'output window, operand 0']
    %7 = vsyncpa [#allocation3], 0
    %s8 = scalar_lea.sflag [#allocation3], 1
    %9 = vsyncpa %s8, 0
    %10 = vsyncpa [#allocation6], 0
    %s11 = scalar_lea.sflag [#allocation6], 1
    %12 = vsyncpa %s11, 0
    %13 = vsyncpa [#allocation4], 0
    %s14 = scalar_lea.sflag [#allocation4], 1
    %15 = vsyncpa %s14, 0
    loop: start=0, step=1, limit=4
    $region2: #{tpu_custom_call.1} parent=1 // loop_pre_header
      _
    $region3: #{tpu_custom_call.1} parent=1 // loop_header
      %s17 = sphi 0, %s21
      %p18 = scmp.ge.s32.totalorder %s17, 4
      %s24 = sphi 0, %s36
      %s25 = sphi 0, %s32
      %s26 = sphi 0, %s24
      %s27 = sphi 0, %s25
      %s28 = sphi 0, %s26
      %s29 = sphi 0, %s27
      %s41 = sphi 0, %s43
      %s44 = sphi 0, %s41
      %s45 = sphi 0, %s44
      %s61 = sphi 0, %s45
      %s69 = sphi 0, %s71
      %s72 = sphi 0, %s69
      %s73 = sphi 0, %s72
      %s89 = sphi 0, %s73
      %s95 = sphi 0, %s97
      %s98 = sphi 0, %s95
      %s99 = sphi 0, %s98
      %s115 = sphi 0, %s99
    $region4: #{tpu_custom_call.1} parent=1 // loop_header_branch
      %20 = sbr.rel (%p18) target = $region8
    $region5: #{tpu_custom_call.1} parent=1 // loop_body
      %s22 = ssub.s32 %s17, 1
      %s23 = ssub.s32 %s17, 2
      %s30 = sadd.s32 1, %s25
      %p31 = scmp.ge.s32.totalorder %s30, 1
      %s32 = scalar_select %p31, 0, %s30
      %s33 = sadd.s32 1, %s24
      %s34 = scalar_select %p31, %s33, %s24
      %p35 = scmp.ge.s32.totalorder %s34, 2
      %s36 = scalar_select %p35, 0, %s34
      %s37 = ssub.s32 %s24, %s36
      %s38 = ssub.s32 %s25, %s32
      %s39 = sor.u32 %s37, %s38
      %p40 = scmp.eq.s32.totalorder %s39, 0
      %s42 = sadd.s32 %s41, 1
      %s43 = scalar_select %p40, %s41, %s42
      %p46 = pneg %p40
      %p47 = scmp.eq.s32.totalorder %s17, 1
      %p48 = por %p46, %p47
      %p49 = scmp.ne.s32.totalorder %s41, %s44
      %p50 = scmp.eq.s32.totalorder %s17, 0
      %p51 = por %p49, %p50
      %p52 = scmp.ne.s32.totalorder %s41, %s44
      %p53 = scmp.eq.s32.totalorder %s22, 1
      %p54 = por %p52, %p53
      %p55 = scmp.ne.s32.totalorder %s44, %s45
      %p56 = scmp.eq.s32.totalorder %s22, 0
      %p57 = por %p55, %p56
      %p58 = scmp.ne.s32.totalorder %s44, %s45
      %p59 = scmp.eq.s32.totalorder %s23, 1
      %p60 = por %p58, %p59
      %p62 = scmp.ne.s32.totalorder %s45, %s61
      %p63 = scmp.eq.s32.totalorder %s23, 0
      %p64 = por %p62, %p63
      %s65 = ssub.s32 %s24, %s36
      %s66 = ssub.s32 %s25, %s32
      %s67 = sor.u32 %s65, %s66
      %p68 = scmp.eq.s32.totalorder %s67, 0
      %s70 = sadd.s32 %s69, 1
      %s71 = scalar_select %p68, %s69, %s70
      %p74 = pneg %p68
      %p75 = scmp.eq.s32.totalorder %s17, 1
      %p76 = por %p74, %p75
      %p77 = scmp.ne.s32.totalorder %s69, %s72
      %p78 = scmp.eq.s32.totalorder %s17, 0
      %p79 = por %p77, %p78
      %p80 = scmp.ne.s32.totalorder %s69, %s72
      %p81 = scmp.eq.s32.totalorder %s22, 1
      %p82 = por %p80, %p81
      %p83 = scmp.ne.s32.totalorder %s72, %s73
      %p84 = scmp.eq.s32.totalorder %s22, 0
      %p85 = por %p83, %p84
      %p86 = scmp.ne.s32.totalorder %s72, %s73
      %p87 = scmp.eq.s32.totalorder %s23, 1
      %p88 = por %p86, %p87
      %p90 = scmp.ne.s32.totalorder %s73, %s89
      %p91 = scmp.eq.s32.totalorder %s23, 0
      %p92 = por %p90, %p91
      %s93 = ssub.s32 %s24, %s36
      %p94 = scmp.eq.s32.totalorder %s93, 0
      %s96 = sadd.s32 %s95, 1
      %s97 = scalar_select %p94, %s95, %s96
      %p100 = pneg %p94
      %p101 = scmp.eq.s32.totalorder %s17, 1
      %p102 = por %p100, %p101
      %p103 = scmp.ne.s32.totalorder %s95, %s98
      %p104 = scmp.eq.s32.totalorder %s17, 0
      %p105 = por %p103, %p104
      %p106 = scmp.ne.s32.totalorder %s95, %s98
      %p107 = scmp.eq.s32.totalorder %s22, 1
      %p108 = por %p106, %p107
      %p109 = scmp.ne.s32.totalorder %s98, %s99
      %p110 = scmp.eq.s32.totalorder %s22, 0
      %p111 = por %p109, %p110
      %p112 = scmp.ne.s32.totalorder %s98, %s99
      %p113 = scmp.eq.s32.totalorder %s23, 1
      %p114 = por %p112, %p113
      %p116 = scmp.ne.s32.totalorder %s99, %s115
      %p117 = scmp.eq.s32.totalorder %s23, 0
      %p118 = por %p116, %p117
      %p119 = scmp.le.s32.totalorder 1, %s17
      %p120 = scmp.lt.s32.totalorder %s17, 3
      %p121 = pnand %p119, %p120
      %p122 = pneg %p121
      // Predicated region
      $region9: #{tpu_custom_call.1} parent=5 // pred_check
        _
      $region10: #{tpu_custom_call.1} parent=5 // pred_check_branch
        %124 = sbr.rel (%p121) target = $region12
      $region11: #{tpu_custom_call.1} parent=5 // pred_region
        %s125 = ssub.s32 %s17, 1
      $region12: #{tpu_custom_call.1} parent=5 // pred_fallthru
        _
      %p126 = scmp.lt.s32.totalorder %s17, 2
      // Predicated region
      $region13: #{tpu_custom_call.1} parent=5 // pred_check
        %p127 = pneg %p126
      $region14: #{tpu_custom_call.1} parent=5 // pred_check_branch
        %129 = sbr.rel (%p127) target = $region16
      $region15: #{tpu_custom_call.1} parent=5 // pred_region
        // Predicated region
        $region17: #{tpu_custom_call.1} parent=15 // pred_check
          %p130 = pneg %p51
        $region18: #{tpu_custom_call.1} parent=15 // pred_check_branch
          %132 = sbr.rel (%p130) target = $region20
        $region19: #{tpu_custom_call.1} parent=15 // pred_region
          %s133 = sand.u32 %s41, 1
          %s134 = scalar_lea.sflag [#allocation3], %s133
          %s135 = sand.u32 %s41, 1
          %s136 = smul.addr %s135, 8
          %s137 = scalar_lea.vmem [#allocation2], %s136
          %s139 = ssub.s32 128, 128
          %140 = vsyncadd %s134, %s139
          %s141 = smul.addr %s24, 4
          %s142 = sadd.s32 %s25, %s141
          %s143 = smul.addr %s142, 32
          %s144 = scalar_lea.hbm %s0, %s143
          %s145 = sshll.u32 %s137, 4
          %s146 = int_to_ptr.vmem [resolvable:$true] %s145
          %151 = dma.hbm_to_vmem [thread:$0]  %s144, 128, %s146, %s134, 32, 32, 2
        $region20: #{tpu_custom_call.1} parent=15 // pred_fallthru
          _
        // Predicated region
        $region21: #{tpu_custom_call.1} parent=15 // pred_check
          %p152 = pneg %p79
        $region22: #{tpu_custom_call.1} parent=15 // pred_check_branch
          %154 = sbr.rel (%p152) target = $region24
        $region23: #{tpu_custom_call.1} parent=15 // pred_region
          %s155 = sand.u32 %s69, 1
          %s156 = scalar_lea.sflag [#allocation6], %s155
          %s157 = sand.u32 %s69, 1
          %s158 = smul.addr %s157, 8
          %s159 = scalar_lea.vmem [#allocation5], %s158
          %s161 = ssub.s32 128, 128
          %162 = vsyncadd %s156, %s161
          %s163 = smul.addr %s24, 4
          %s164 = sadd.s32 %s25, %s163
          %s165 = smul.addr %s164, 32
          %s166 = scalar_lea.hbm %s1, %s165
          %s167 = sshll.u32 %s159, 4
          %s168 = int_to_ptr.vmem [resolvable:$true] %s167
          %173 = dma.hbm_to_vmem [thread:$0]  %s166, 128, %s168, %s156, 32, 32, 2
        $region24: #{tpu_custom_call.1} parent=15 // pred_fallthru
          _
      $region16: #{tpu_custom_call.1} parent=5 // pred_fallthru
        _
      %p174 = scmp.le.s32.totalorder 1, %s17
      %p175 = scmp.lt.s32.totalorder %s17, 3
      %p176 = pnand %p174, %p175
      %p177 = pneg %p176
      // Predicated region
      $region25: #{tpu_custom_call.1} parent=5 // pred_check
        _
      $region26: #{tpu_custom_call.1} parent=5 // pred_check_branch
        %179 = sbr.rel (%p176) target = $region28
      $region27: #{tpu_custom_call.1} parent=5 // pred_region
        %s180 = ssub.s32 %s17, 1
        %s181 = sand.u32 %s44, 1
        %s182 = scalar_lea.sflag [#allocation3], %s181
        %s183 = sand.u32 %s44, 1
        %s184 = smul.addr %s183, 8
        %s185 = scalar_lea.vmem [#allocation2], %s184
        // Predicated region
        $region29: #{tpu_custom_call.1} parent=27 // pred_check
          %p186 = pneg %p57
        $region30: #{tpu_custom_call.1} parent=27 // pred_check_branch
          %188 = sbr.rel (%p186) target = $region32
        $region31: #{tpu_custom_call.1} parent=27 // pred_region
          %189 = dma.done %s182, 128
        $region32: #{tpu_custom_call.1} parent=27 // pred_fallthru
          _
        %s190 = sand.u32 %s72, 1
        %s191 = scalar_lea.sflag [#allocation6], %s190
        %s192 = sand.u32 %s72, 1
        %s193 = smul.addr %s192, 8
        %s194 = scalar_lea.vmem [#allocation5], %s193
        // Predicated region
        $region33: #{tpu_custom_call.1} parent=27 // pred_check
          %p195 = pneg %p85
        $region34: #{tpu_custom_call.1} parent=27 // pred_check_branch
          %197 = sbr.rel (%p195) target = $region36
        $region35: #{tpu_custom_call.1} parent=27 // pred_region
          %198 = dma.done %s191, 128
        $region36: #{tpu_custom_call.1} parent=27 // pred_fallthru
          _
        %s199 = sand.u32 %s44, 1
        %s200 = scalar_lea.sflag [#allocation3], %s199
        %s201 = sand.u32 %s44, 1
        %s202 = smul.addr %s201, 8
        %s203 = scalar_lea.vmem [#allocation2], %s202
        %p204 = pneg %p57
        %p205 = pneg %p54
        %s206 = sand.u32 %s72, 1
        %s207 = scalar_lea.sflag [#allocation6], %s206
        %s208 = sand.u32 %s72, 1
        %s209 = smul.addr %s208, 8
        %s210 = scalar_lea.vmem [#allocation5], %s209
        %p211 = pneg %p85
        %p212 = pneg %p82
        %p213 = pneg %p111
        %p214 = pneg %p108
        %s215 = sand.u32 %s98, 1
        %s216 = scalar_lea.sflag [#allocation4], %s215
        %s217 = sand.u32 %s98, 1
        %s218 = smul.addr %s217, 8
        %s219 = scalar_lea.vmem [#allocation7], %s218
        %v220 = vld [vmem:[%s185] sm:$0x3]
        %v221 = vld [vmem:[%s185 + $0x2] sm:$0x3]
        %v222 = vld [vmem:[%s185 + $0x4] sm:$0x3]
        %v223 = vld [vmem:[%s185 + $0x6] sm:$0x3]
        %v224 = vld [vmem:[%s194] sm:$0x3]
        %v225 = vld [vmem:[%s194 + $0x2] sm:$0x3]
        %v226 = vld [vmem:[%s194 + $0x4] sm:$0x3]
        %v227 = vld [vmem:[%s194 + $0x6] sm:$0x3]
        %v228 = vsub.f32 %v220, %v224
        %v229 = vsub.f32 %v221, %v225
        %v230 = vsub.f32 %v222, %v226
        %v231 = vsub.f32 %v223, %v227
        %vm232 = vcmask 1041408
        %v233 = vsel %vm232, %v228, 0.0
        %v234 = vsel %vm232, %v229, 0.0
        %v235 = vadd.f32 %v233, %v234
        %v236 = vsel %vm232, %v230, 0.0
        %v237 = vadd.f32 %v235, %v236
        %v238 = vsel %vm232, %v231, 0.0
        %v239 = vadd.f32 %v237, %v238
        %v240 = vmul.f32 %v239, %v239
        %v241 = vsel %vm232, %v240, 0.0
        %242 = vadd.xlane.f32.xlu0 %v241
        %v243 = vpop.xlane.xlu0 %242
        %v244 = vrot.slane %v243, 4
        %v245 = vadd.f32 %v243, %v244
        %v246 = vrot.slane %v245, 2
        %v247 = vadd.f32 %v245, %v246
        %v248 = vrot.slane %v247, 1
        %v249 = vadd.f32 %v247, %v248
        %s250 = vtos %v249
        %v251 = vstv %s250
        %v252 = vadd.f32 %v251, 0.0
        %253 = vst [vmem:[%s219] sm:$0xff] %v252
        %s254 = sand.u32 %s98, 1
        %s255 = scalar_lea.sflag [#allocation4], %s254
        %s256 = sand.u32 %s98, 1
        %s257 = smul.addr %s256, 8
        %s258 = scalar_lea.vmem [#allocation7], %s257
        // Predicated region
        $region37: #{tpu_custom_call.1} parent=27 // pred_check
          %p259 = pneg %p108
        $region38: #{tpu_custom_call.1} parent=27 // pred_check_branch
          %261 = sbr.rel (%p259) target = $region40
        $region39: #{tpu_custom_call.1} parent=27 // pred_region
          %s263 = ssub.s32 128, 128
          %264 = vsyncadd %s255, %s263
          %s265 = smul.addr %s26, 128
          %s266 = scalar_lea.hbm %s2, %s265
          %s268 = sshll.u32 %s258, 4
          %s269 = int_to_ptr.vmem [resolvable:$true] %s268
          %271 = dma.vmem_to_hbm [thread:$0]  %s269, 128, %s266, %s255
        $region40: #{tpu_custom_call.1} parent=27 // pred_fallthru
          _
      $region28: #{tpu_custom_call.1} parent=5 // pred_fallthru
        _
      %p272 = scmp.le.s32.totalorder 2, %s17
      // Predicated region
      $region41: #{tpu_custom_call.1} parent=5 // pred_check
        %p273 = pneg %p272
      $region42: #{tpu_custom_call.1} parent=5 // pred_check_branch
        %275 = sbr.rel (%p273) target = $region44
      $region43: #{tpu_custom_call.1} parent=5 // pred_region
        %s276 = ssub.s32 %s17, 2
        // Predicated region
        $region45: #{tpu_custom_call.1} parent=43 // pred_check
          %p277 = pneg %p114
        $region46: #{tpu_custom_call.1} parent=43 // pred_check_branch
          %279 = sbr.rel (%p277) target = $region48
        $region47: #{tpu_custom_call.1} parent=43 // pred_region
          %s280 = sand.u32 %s99, 1
          %s281 = scalar_lea.sflag [#allocation4], %s280
          %s282 = sand.u32 %s99, 1
          %s283 = smul.addr %s282, 8
          %s284 = scalar_lea.vmem [#allocation7], %s283
          %285 = dma.done %s281, 128
        $region48: #{tpu_custom_call.1} parent=43 // pred_fallthru
          _
      $region44: #{tpu_custom_call.1} parent=5 // pred_fallthru
        _
    $region6: #{tpu_custom_call.1} parent=1 // loop_footer
      %s21 = sadd.s32 1, %s17
    $region7: #{tpu_custom_call.1} parent=1 // loop_footer_branch
      %16 = sbr.rel target = $region3
    $region8: #{tpu_custom_call.1} parent=1 // loop_exit
      _
    %286 = vsyncpa [#allocation3], 1
    %s287 = scalar_lea.sflag [#allocation3], 1
    %288 = vsyncpa %s287, 1
    %289 = vsyncpa [#allocation6], 1
    %s290 = scalar_lea.sflag [#allocation6], 1
    %291 = vsyncpa %s290, 1
    %292 = vsyncpa [#allocation4], 1
    %s293 = scalar_lea.sflag [#allocation4], 1
    %294 = vsyncpa %s293, 1

</llo_original>
